<compile_context>
chip_gen: v5e
topology: v5e:2x2
jax: 0.10.0
libtpu: 0.0.40
codegen_flags: <defaults>
</compile_context>

<pallas_src>
import functools

import numpy as np
import jax
import jax.numpy as jnp
from jax.experimental import pallas as pl
from jax.experimental.pallas import tpu as pltpu


# ---------------------------------------------------------------------------
# Deterministic bicubic resample matrices (no learnable parameters).
# ---------------------------------------------------------------------------
def _cubic_kernel(x, a=-0.75):
    x = np.abs(np.asarray(x, dtype=np.float64))
    w1 = ((a + 2.0) * x - (a + 3.0)) * x * x + 1.0
    w2 = (((x - 5.0) * x + 8.0) * x - 4.0) * a
    return np.where(x < 1.0, w1, np.where(x < 2.0, w2, 0.0))


def _resample_matrix(out_size, in_size, a=-0.75, antialias=True):
    """Dense (out_size, in_size) 1-D bicubic resample matrix.
    antialias=True widens the kernel support by the downscale factor
    (PIL / torchvision antialias behaviour); upscaling is unaffected."""
    scale = in_size / out_size
    fscale = max(scale, 1.0) if antialias else 1.0
    support = 2.0 * fscale
    mat = np.zeros((out_size, in_size), dtype=np.float64)
    for i in range(out_size):
        center = (i + 0.5) * scale - 0.5
        lo = int(np.floor(center - support + 1.0))
        hi = int(np.floor(center + support))
        idx = np.arange(lo, hi + 1)
        w = _cubic_kernel((idx - center) / fscale, a)
        s = w.sum()
        if s != 0.0:
            w = w / s
        np.add.at(mat[i], np.clip(idx, 0, in_size - 1), w)  # border replicate
    return mat.astype(np.float32)


def _padded_resample_matrices(height, width, max_size, antialias=True):
    """Resample matrices with the output padding baked in as zero rows/cols."""
    scale = max_size / float(max(height, width))
    new_h = int(round(height * scale))
    new_w = int(round(width * scale))
    pad_top = (max_size - new_h) // 2
    pad_left = (max_size - new_w) // 2
    wh = np.zeros((max_size, height), dtype=np.float32)
    wh[pad_top:pad_top + new_h, :] = _resample_matrix(new_h, height,
                                                      antialias=antialias)
    wwt = np.zeros((width, max_size), dtype=np.float32)
    wwt[:, pad_left:pad_left + new_w] = _resample_matrix(new_w, width,
                                                         antialias=antialias).T
    return wh, wwt, new_h, new_w, pad_top, pad_left


# ---------------------------------------------------------------------------
# Pallas kernel: per-channel  out = Wh_pad @ img @ WwT_pad   (+ fill strips)
# ---------------------------------------------------------------------------
def _resize_pad_kernel(wh_ref, wwt_ref, img_ref, out_ref, *,
                       rows_first, fill, pad_top, pad_left,
                       new_h, new_w, out_size):
    wh = wh_ref[...]            # (out_size, H)  compute dtype (bf16)
    wwt = wwt_ref[...]          # (W, out_size)
    img = img_ref[0]            # (H, W)

    # Contract the longer original axis first (chosen statically in wrapper).
    if rows_first:              # H >= W : rows first
        t = jnp.dot(wh, img, preferred_element_type=jnp.float32)       # (out, W)
        r = jnp.dot(t.astype(wwt.dtype), wwt,
                    preferred_element_type=jnp.float32)                 # (out, out)
    else:                       # W > H : cols first
        t = jnp.dot(img, wwt, preferred_element_type=jnp.float32)      # (H, out)
        r = jnp.dot(wh, t.astype(wh.dtype),
                    preferred_element_type=jnp.float32)                 # (out, out)

    if jnp.issubdtype(out_ref.dtype, jnp.integer):
        info = jnp.iinfo(out_ref.dtype)
        r = jnp.clip(jnp.round(r), info.min, info.max)

    # Single lane-dense, unmasked full-block store (padding already zero via
    # the zero rows/cols baked into wh/wwt).
    out_ref[0] = r.astype(out_ref.dtype)

    # Non-zero fill: overwrite only the four border strips with static slices
    # (Python-int offsets; no full-size temp, no dynamic_update_slice).
    if fill != 0.0:
        if pad_top > 0:
            out_ref[0, :pad_top, :] = jnp.full((pad_top, out_size), fill,
                                               out_ref.dtype)
        if pad_top + new_h < out_size:
            nb = out_size - (pad_top + new_h)
            out_ref[0, pad_top + new_h:, :] = jnp.full((nb, out_size), fill,
                                                       out_ref.dtype)
        if pad_left > 0:
            out_ref[0, :, :pad_left] = jnp.full((out_size, pad_left), fill,
                                                out_ref.dtype)
        if pad_left + new_w < out_size:
            nr = out_size - (pad_left + new_w)
            out_ref[0, :, pad_left + new_w:] = jnp.full((out_size, nr), fill,
                                                        out_ref.dtype)


# ---------------------------------------------------------------------------
# Wrapper (== ResizeMaxSize.forward for tensor inputs, HWC layout)
# ---------------------------------------------------------------------------
def resize_max_size(img_hwc, max_size, fill=0.0, antialias=True,
                    compute_dtype=jnp.bfloat16):
    if not isinstance(max_size, int):
        raise TypeError(f"Size should be int. Got {type(max_size)}")

    height, width = img_hwc.shape[:2]       # matches original img.shape[:2]
    channels = img_hwc.shape[2]
    scale = max_size / float(max(height, width))
    if scale == 1.0:
        return img_hwc                       # original returns img untouched

    wh_np, wwt_np, new_h, new_w, pad_top, pad_left = _padded_resample_matrices(
        height, width, max_size, antialias=antialias)

    rows_first = height >= width             # contract the longer axis first

    wh = jnp.asarray(wh_np, dtype=compute_dtype)      # (max_size, H)
    wwt = jnp.asarray(wwt_np, dtype=compute_dtype)    # (W, max_size)
    # Cast to bf16 BEFORE the HWC->CHW transpose so the transpose moves half
    # the HBM bytes.  (If the producer holds planar CHW data already, feed it
    # directly and drop this transpose — it is pure HBM traffic.)
    img_chw = jnp.transpose(img_hwc.astype(compute_dtype), (2, 0, 1))

    out_dtype = img_hwc.dtype
    out_bpe = jnp.dtype(out_dtype).itemsize
    cpe = jnp.dtype(compute_dtype).itemsize

    if rows_first:
        flops = 2 * channels * (max_size * height * width
                                + max_size * width * max_size)
    else:
        flops = 2 * channels * (height * width * max_size
                                + max_size * height * max_size)
    bytes_accessed = (channels * height * width * cpe
                      + (max_size * height + width * max_size) * cpe
                      + channels * max_size * max_size * out_bpe)

    # Explicit VMEM budget: double-buffered image & output blocks, the two
    # (grid-invariant) weight blocks, plus f32 intermediates; floor 32 MiB
    # (above the v5e 16 MiB scoped default), cap below v7x's 64 MiB physical.
    vmem_needed = (2 * height * width * cpe
                   + 2 * max_size * max_size * out_bpe
                   + 2 * (max_size * height + width * max_size) * cpe
                   + 4 * (max_size * max(height, width) + max_size * max_size))
    vmem_limit = int(min(max(2 * vmem_needed, 32 * 1024 * 1024),
                         56 * 1024 * 1024))

    kernel = functools.partial(
        _resize_pad_kernel,
        rows_first=rows_first, fill=float(fill),
        pad_top=pad_top, pad_left=pad_left,
        new_h=new_h, new_w=new_w, out_size=max_size)

    out_chw = pl.pallas_call(
        kernel,
        out_shape=jax.ShapeDtypeStruct((channels, max_size, max_size),
                                       out_dtype),
        grid_spec=pltpu.PrefetchScalarGridSpec(
            num_scalar_prefetch=0,
            grid=(channels,),
            in_specs=[
                pl.BlockSpec((max_size, height), lambda c: (0, 0)),     # Wh
                pl.BlockSpec((width, max_size), lambda c: (0, 0)),      # WwT
                pl.BlockSpec((1, height, width), lambda c: (c, 0, 0)),  # img
            ],
            out_specs=pl.BlockSpec((1, max_size, max_size),
                                   lambda c: (c, 0, 0)),
        ),
        compiler_params=pltpu.CompilerParams(
            dimension_semantics=("parallel",),
            vmem_limit_bytes=vmem_limit),
        cost_estimate=pl.CostEstimate(
            flops=flops, transcendentals=0, bytes_accessed=bytes_accessed),
    )(wh, wwt, img_chw)

    return jnp.transpose(out_chw, (1, 2, 0))   # back to HWC


if __name__ == "__main__":
    key = jax.random.PRNGKey(0)
    # Small HWC image: 20 x 16 x 3, max_size = 16  ->  scale = 0.8,
    # resized to (16, 13), padded (left=1, right=2) to (16, 16, 3).
    H, W, C, MAX = 20, 16, 3, 16
    img = jax.random.uniform(key, (H, W, C), dtype=jnp.float32)

    out = resize_max_size(img, max_size=MAX, fill=0.0)
    out = jax.block_until_ready(out)

    assert out.shape == (MAX, MAX, C), out.shape
    assert out.dtype == jnp.float32

    # Pure-numpy reference using the same (padded) resample matrices in f64;
    # tolerance accounts for bf16 MXU inputs with f32 accumulation.
    wh_np, wwt_np, new_h, new_w, pad_top, pad_left = _padded_resample_matrices(
        H, W, MAX)
    img_np = np.asarray(img, dtype=np.float64)
    ref = np.stack(
        [wh_np.astype(np.float64) @ img_np[:, :, c] @ wwt_np.astype(np.float64)
         for c in range(C)], axis=-1)
    err = float(np.max(np.abs(np.asarray(out, dtype=np.float64) - ref)))
    assert err < 5e-2, f"max abs err vs reference: {err}"

    # Padded columns (pad_left=1, new_w=13 -> cols 0, 14, 15) must be fill.
    assert bool(jnp.all(out[:, 0, :] == 0.0))
    assert bool(jnp.all(out[:, -2:, :] == 0.0))
    print("KERNEL_OK")
</pallas_src>

<mosaic_0001>
module attributes {stable_mosaic.version = 11 : i64} {
  func.func @_resize_pad_kernel(%arg0: i32, %arg1: memref<16x20xbf16, #tpu.memory_space<vmem>>, %arg2: memref<16x16xbf16, #tpu.memory_space<vmem>>, %arg3: memref<1x20x16xbf16, #tpu.memory_space<vmem>>, %arg4: memref<1x16x16xf32, #tpu.memory_space<vmem>>) attributes {dimension_semantics = [#tpu.dimension_semantics<parallel>], iteration_bounds = array<i64: 3>, scalar_prefetch = 0 : i64, scratch_operands = 0 : i64, tpu.core_type = #tpu.core_type<tc>, window_params = [{pipeline_mode = #tpu.pipeline_mode<synchronous>, transform_indices = @transform_0, window_bounds = array<i64: 16, 20>}, {pipeline_mode = #tpu.pipeline_mode<synchronous>, transform_indices = @transform_1, window_bounds = array<i64: 16, 16>}, {transform_indices = @transform_2, window_bounds = array<i64: 1, 20, 16>}, {transform_indices = @transform_3, window_bounds = array<i64: 1, 16, 16>}]} {
    %c0 = arith.constant 0 : index
    %c0_0 = arith.constant 0 : index
    %0 = vector.load %arg1[%c0, %c0_0] : memref<16x20xbf16, #tpu.memory_space<vmem>>, vector<16x20xbf16>
    %c0_1 = arith.constant 0 : index
    %c0_2 = arith.constant 0 : index
    %1 = vector.load %arg2[%c0_1, %c0_2] : memref<16x16xbf16, #tpu.memory_space<vmem>>, vector<16x16xbf16>
    %c0_3 = arith.constant 0 : index
    %c0_4 = arith.constant 0 : index
    %c0_5 = arith.constant 0 : index
    %2 = vector.load %arg3[%c0_3, %c0_4, %c0_5] : memref<1x20x16xbf16, #tpu.memory_space<vmem>>, vector<1x20x16xbf16>
    %3 = vector.shape_cast %2 : vector<1x20x16xbf16> to vector<20x16xbf16>
    %cst = arith.constant dense<0.000000e+00> : vector<16x16xf32>
    %4 = tpu.matmul %0, %3, %cst {dimension_numbers = #tpu.dot_dimension_numbers<[1], [0], [0], [1], [0, 0, 1, 1], [], []>} : vector<16x20xbf16>, vector<20x16xbf16>, vector<16x16xf32> -> vector<16x16xf32>
    %5 = arith.truncf %4 : vector<16x16xf32> to vector<16x16xbf16>
    %cst_6 = arith.constant dense<0.000000e+00> : vector<16x16xf32>
    %6 = tpu.matmul %5, %1, %cst_6 {dimension_numbers = #tpu.dot_dimension_numbers<[1], [0], [0], [1], [0, 0, 1, 1], [], []>} : vector<16x16xbf16>, vector<16x16xbf16>, vector<16x16xf32> -> vector<16x16xf32>
    %c0_7 = arith.constant 0 : index
    %c0_8 = arith.constant 0 : index
    %c0_9 = arith.constant 0 : index
    %7 = vector.load %arg4[%c0_7, %c0_8, %c0_9] : memref<1x16x16xf32, #tpu.memory_space<vmem>>, vector<1x16x16xf32>
    %8 = vector.shape_cast %7 : vector<1x16x16xf32> to vector<16x16xf32>
    %9 = vector.shape_cast %6 : vector<16x16xf32> to vector<1x16x16xf32>
    tpu.vector_store %arg4[%c0_7, %c0_8, %c0_9], %9 {strides = array<i32>} : memref<1x16x16xf32, #tpu.memory_space<vmem>>, vector<1x16x16xf32>,
    return
  }
  func.func @transform_0(%arg0: i32) -> (i32, i32) {
    %c0_i32 = arith.constant 0 : i32
    %c0_i32_0 = arith.constant 0 : i32
    %c0_i32_1 = arith.constant 0 : i32
    return %c0_i32, %c0_i32_0 : i32, i32
  }
  func.func @transform_1(%arg0: i32) -> (i32, i32) {
    %c0_i32 = arith.constant 0 : i32
    %c0_i32_0 = arith.constant 0 : i32
    %c0_i32_1 = arith.constant 0 : i32
    return %c0_i32, %c0_i32_0 : i32, i32
  }
  func.func @transform_2(%arg0: i32) -> (i32, i32, i32) {
    %c0_i32 = arith.constant 0 : i32
    %c0_i32_0 = arith.constant 0 : i32
    %c0_i32_1 = arith.constant 0 : i32
    return %arg0, %c0_i32, %c0_i32_0 : i32, i32, i32
  }
  func.func @transform_3(%arg0: i32) -> (i32, i32, i32) {
    %c0_i32 = arith.constant 0 : i32
    %c0_i32_0 = arith.constant 0 : i32
    %c0_i32_1 = arith.constant 0 : i32
    return %arg0, %c0_i32, %c0_i32_0 : i32, i32, i32
  }
}

</mosaic_0001>

<llo_original>
// kernel: tpu_custom_call.1
$region0: #{tpu_custom_call.1}
  #allocation0 [shape = 'u32[]', space=smem, size = 0x4, offset = 0x4, fixed_abs, tag = 'smem constant byte address 0x4 - core index']
  #allocation1 [shape = 'u32[72,128]{1,0:T(1,128)}', space=vmem, size = 0x9000, scoped, tag = 'internal scratch']
  %s0 = inlined_call_operand.vmem [shape: bf16[16,20], index: 0, kind: input, shape index: {}]
  %s1 = inlined_call_operand.vmem [shape: bf16[16,16], index: 1, kind: input, shape index: {}]
  %s2 = inlined_call_operand.vmem [shape: bf16[3,20,16], index: 2, kind: input, shape index: {}]
  %s3 = inlined_call_operand.hbm [shape: f32[3,16,16], index: 3, kind: output, shape index: {}]
  %s4 = sld [smem:[#allocation0]]
  $region45: #{tpu_custom_call.1} parent=0
    _
  %s6 = ssub.s32 1, %s4
  %s7 = scalar_select 0, %s6, %s4
  $region1: #{tpu_custom_call.1} parent=0
    #allocation2 [shape = 'u8[16384]{0}', space=vmem, size = 0x4000, scoped, tag = 'output window, operand 0']
    #allocation3 [shape = 's32[2]{0}', space=sflag, size = 0x8, scoped, tag = 'scoped memory for tpu_custom_call.1']
    %8 = vsyncpa [#allocation3], 0
    %s9 = scalar_lea.sflag [#allocation3], 1
    %10 = vsyncpa %s9, 0
    loop: start=0, step=1, limit=5
    $region2: #{tpu_custom_call.1} parent=1 // loop_pre_header
      _
    $region3: #{tpu_custom_call.1} parent=1 // loop_header
      %s12 = sphi 0, %s16
      %p13 = scmp.ge.s32.totalorder %s12, 5
      %s20 = sphi 0, %s20
      %s22 = sphi 0, %s20
      %s23 = sphi 0, %s22
      %s37 = sphi 0, %s23
      %s41 = sphi 0, %s41
      %s43 = sphi 0, %s41
      %s44 = sphi 0, %s43
      %s58 = sphi 0, %s44
      %s64 = sphi 0, %s66
      %s67 = sphi 0, %s64
      %s68 = sphi 0, %s67
      %s84 = sphi 0, %s68
      %s90 = sphi 0, %s92
      %s93 = sphi 0, %s90
      %s94 = sphi 0, %s93
      %s110 = sphi 0, %s94
    $region4: #{tpu_custom_call.1} parent=1 // loop_header_branch
      %15 = sbr.rel (%p13) target = $region8
    $region5: #{tpu_custom_call.1} parent=1 // loop_body
      %s17 = ssub.s32 %s12, 1
      %s18 = ssub.s32 %s12, 2
      %s19 = sadd.s32 %s12, 1
      %s21 = sadd.s32 %s20, 1
      %p24 = scmp.eq.s32.totalorder %s12, 2
      %p25 = scmp.ne.s32.totalorder %s20, %s22
      %p26 = scmp.eq.s32.totalorder %s12, 0
      %p27 = por %p25, %p26
      %p28 = scmp.ne.s32.totalorder %s20, %s22
      %p29 = scmp.eq.s32.totalorder %s17, 2
      %p30 = por %p28, %p29
      %p31 = scmp.ne.s32.totalorder %s22, %s23
      %p32 = scmp.eq.s32.totalorder %s17, 0
      %p33 = por %p31, %p32
      %p34 = scmp.ne.s32.totalorder %s22, %s23
      %p35 = scmp.eq.s32.totalorder %s18, 2
      %p36 = por %p34, %p35
      %p38 = scmp.ne.s32.totalorder %s23, %s37
      %p39 = scmp.eq.s32.totalorder %s18, 0
      %p40 = por %p38, %p39
      %s42 = sadd.s32 %s41, 1
      %p45 = scmp.eq.s32.totalorder %s12, 2
      %p46 = scmp.ne.s32.totalorder %s41, %s43
      %p47 = scmp.eq.s32.totalorder %s12, 0
      %p48 = por %p46, %p47
      %p49 = scmp.ne.s32.totalorder %s41, %s43
      %p50 = scmp.eq.s32.totalorder %s17, 2
      %p51 = por %p49, %p50
      %p52 = scmp.ne.s32.totalorder %s43, %s44
      %p53 = scmp.eq.s32.totalorder %s17, 0
      %p54 = por %p52, %p53
      %p55 = scmp.ne.s32.totalorder %s43, %s44
      %p56 = scmp.eq.s32.totalorder %s18, 2
      %p57 = por %p55, %p56
      %p59 = scmp.ne.s32.totalorder %s44, %s58
      %p60 = scmp.eq.s32.totalorder %s18, 0
      %p61 = por %p59, %p60
      %s62 = ssub.s32 %s12, %s19
      %p63 = scmp.eq.s32.totalorder %s62, 0
      %s65 = sadd.s32 %s64, 1
      %s66 = scalar_select %p63, %s64, %s65
      %p69 = pneg %p63
      %p70 = scmp.eq.s32.totalorder %s12, 2
      %p71 = por %p69, %p70
      %p72 = scmp.ne.s32.totalorder %s64, %s67
      %p73 = scmp.eq.s32.totalorder %s12, 0
      %p74 = por %p72, %p73
      %p75 = scmp.ne.s32.totalorder %s64, %s67
      %p76 = scmp.eq.s32.totalorder %s17, 2
      %p77 = por %p75, %p76
      %p78 = scmp.ne.s32.totalorder %s67, %s68
      %p79 = scmp.eq.s32.totalorder %s17, 0
      %p80 = por %p78, %p79
      %p81 = scmp.ne.s32.totalorder %s67, %s68
      %p82 = scmp.eq.s32.totalorder %s18, 2
      %p83 = por %p81, %p82
      %p85 = scmp.ne.s32.totalorder %s68, %s84
      %p86 = scmp.eq.s32.totalorder %s18, 0
      %p87 = por %p85, %p86
      %s88 = ssub.s32 %s12, %s19
      %p89 = scmp.eq.s32.totalorder %s88, 0
      %s91 = sadd.s32 %s90, 1
      %s92 = scalar_select %p89, %s90, %s91
      %p95 = pneg %p89
      %p96 = scmp.eq.s32.totalorder %s12, 2
      %p97 = por %p95, %p96
      %p98 = scmp.ne.s32.totalorder %s90, %s93
      %p99 = scmp.eq.s32.totalorder %s12, 0
      %p100 = por %p98, %p99
      %p101 = scmp.ne.s32.totalorder %s90, %s93
      %p102 = scmp.eq.s32.totalorder %s17, 2
      %p103 = por %p101, %p102
      %p104 = scmp.ne.s32.totalorder %s93, %s94
      %p105 = scmp.eq.s32.totalorder %s17, 0
      %p106 = por %p104, %p105
      %p107 = scmp.ne.s32.totalorder %s93, %s94
      %p108 = scmp.eq.s32.totalorder %s18, 2
      %p109 = por %p107, %p108
      %p111 = scmp.ne.s32.totalorder %s94, %s110
      %p112 = scmp.eq.s32.totalorder %s18, 0
      %p113 = por %p111, %p112
      %p114 = scmp.le.s32.totalorder 1, %s12
      %p115 = scmp.lt.s32.totalorder %s12, 4
      %p116 = pnand %p114, %p115
      %p117 = pneg %p116
      // Predicated region
      $region9: #{tpu_custom_call.1} parent=5 // pred_check
        _
      $region10: #{tpu_custom_call.1} parent=5 // pred_check_branch
        %119 = sbr.rel (%p116) target = $region12
      $region11: #{tpu_custom_call.1} parent=5 // pred_region
        %s120 = ssub.s32 %s12, 1
        // Predicated region
        $region13: #{tpu_custom_call.1} parent=11 // pred_check
          %p121 = pneg %p33
        $region14: #{tpu_custom_call.1} parent=11 // pred_check_branch
          %123 = sbr.rel (%p121) target = $region16
        $region15: #{tpu_custom_call.1} parent=11 // pred_region
          _
        $region16: #{tpu_custom_call.1} parent=11 // pred_fallthru
          _
        // Predicated region
        $region17: #{tpu_custom_call.1} parent=11 // pred_check
          %p124 = pneg %p54
        $region18: #{tpu_custom_call.1} parent=11 // pred_check_branch
          %126 = sbr.rel (%p124) target = $region20
        $region19: #{tpu_custom_call.1} parent=11 // pred_region
          _
        $region20: #{tpu_custom_call.1} parent=11 // pred_fallthru
          _
      $region12: #{tpu_custom_call.1} parent=5 // pred_fallthru
        _
      %p127 = scmp.lt.s32.totalorder %s12, 3
      // Predicated region
      $region21: #{tpu_custom_call.1} parent=5 // pred_check
        %p128 = pneg %p127
      $region22: #{tpu_custom_call.1} parent=5 // pred_check_branch
        %130 = sbr.rel (%p128) target = $region24
      $region23: #{tpu_custom_call.1} parent=5 // pred_region
        // Predicated region
        $region25: #{tpu_custom_call.1} parent=23 // pred_check
          %p131 = pneg %p74
        $region26: #{tpu_custom_call.1} parent=23 // pred_check_branch
          %133 = sbr.rel (%p131) target = $region28
        $region27: #{tpu_custom_call.1} parent=23 // pred_region
          %p134 = scmp.lt.s32.totalorder %s12, 2
          %s135 = scalar_select %p134, %s12, 2
          %s136 = smul.addr %s135, 3
          %s137 = smul.addr %s136, 4
          %s138 = scalar_lea.vmem %s2, %s137
        $region28: #{tpu_custom_call.1} parent=23 // pred_fallthru
          _
      $region24: #{tpu_custom_call.1} parent=5 // pred_fallthru
        _
      %p139 = scmp.le.s32.totalorder 1, %s12
      %p140 = scmp.lt.s32.totalorder %s12, 4
      %p141 = pnand %p139, %p140
      %p142 = pneg %p141
      // Predicated region
      $region29: #{tpu_custom_call.1} parent=5 // pred_check
        _
      $region30: #{tpu_custom_call.1} parent=5 // pred_check_branch
        %144 = sbr.rel (%p141) target = $region32
      $region31: #{tpu_custom_call.1} parent=5 // pred_region
        %s145 = ssub.s32 %s12, 1
        %p146 = pneg %p33
        %p147 = pneg %p30
        %p148 = pneg %p54
        %p149 = pneg %p51
        %p150 = scmp.lt.s32.totalorder %s17, 2
        %s151 = scalar_select %p150, %s17, 2
        %s152 = smul.addr %s151, 3
        %s153 = smul.addr %s152, 4
        %s154 = scalar_lea.vmem %s2, %s153
        %p155 = pneg %p80
        %p156 = pneg %p77
        %p157 = pneg %p106
        %p158 = pneg %p103
        %s159 = sand.u32 %s93, 1
        %s160 = scalar_lea.sflag [#allocation3], %s159
        %s161 = sand.u32 %s93, 1
        %s162 = smul.addr %s161, 16
        %s163 = scalar_lea.vmem [#allocation2], %s162
        %p164 = scmp.lt.s32.totalorder %s17, 2
        %s165 = scalar_select %p164, %s17, 2
        %s166 = smul.addr %s165, 3
        %s167 = smul.addr %s166, 4
        %s168 = scalar_lea.vmem %s2, %s167
        %v170 = vld [vmem:[%s0] sm:$0xf]
        %v171 = vld [vmem:[%s0 + $0x4] sm:$0xf]
        %v172 = vld [vmem:[%s1] sm:$0xf]
        %v173 = vld [vmem:[%s1 + $0x4] sm:$0xf]
        %v174 = vld [vmem:[%s168] sm:$0xf]
        %v175 = vld [vmem:[%s168 + $0x4] sm:$0xf]
        %v176 = vld [vmem:[%s168 + $0x8] sm:$0x3]
        %v179 = vunpack.c.l.b16 %v170
        %v180 = vunpack.c.l.b16 %v171
        %v181 = vpack.c.b16 %v180, %v179
        %v185 = vunpack.c.l.b16 %v174
        %v186 = vunpack.c.l.b16 %v175
        %v187 = vunpack.c.l.b16 %v176
        %v188 = vpack.c.b16 %v186, %v185
        %v189 = vpack.c.b16 %v187, %v187
        %vm191 = vcmask 162816
        %v193 = vsel %vm191, %v181, 0
        %vm195 = vcmask 1041408
        %v197 = vsel %vm195, %v189, 0
        %199 = vmatpush.bf16.msra.mxu0 0
        %200 = vmatpush.bf16.msra.mxu0 0
        %201 = vmatpush.bf16.msra.mxu0 0
        %202 = vmatpush.bf16.msra.mxu0 0
        %203 = vmatpush.bf16.msra.mxu0 0
        %204 = vmatpush.bf16.msra.mxu0 0
        %205 = vmatpush.bf16.msra.mxu0 %v197
        %206 = vmatpush.bf16.msra.mxu0 %v188
        %207 = vmatmul.bf16.gmra.mxu0 %v193
        %v208 = vpop.f32.mrf.mxu0
        %v209 = vadd.f32 0.0, %v208
        %v210 = vpop.f32.mrf.mxu0
        %v211 = vadd.f32 0.0, %v210
        %212 = vdwg.mxu0
        %v213 = vpack.c.bf16 %v211, %v209
        %v216 = vunpack.c.l.b16 %v172
        %v217 = vunpack.c.l.b16 %v173
        %v218 = vpack.c.b16 %v217, %v216
        %vm220 = vcmask 130048
        %v222 = vsel %vm220, %v213, 0
        %224 = vmatpush.bf16.msra.mxu0 0
        %225 = vmatpush.bf16.msra.mxu0 0
        %226 = vmatpush.bf16.msra.mxu0 0
        %227 = vmatpush.bf16.msra.mxu0 0
        %228 = vmatpush.bf16.msra.mxu0 0
        %229 = vmatpush.bf16.msra.mxu0 0
        %230 = vmatpush.bf16.msra.mxu0 0
        %231 = vmatpush.bf16.msra.mxu0 %v218
        %232 = vmatmul.bf16.gmra.mxu0 %v222
        %v233 = vpop.f32.mrf.mxu0
        %v234 = vadd.f32 0.0, %v233
        %v235 = vpop.f32.mrf.mxu0
        %v236 = vadd.f32 0.0, %v235
        %237 = vdwg.mxu0
        %238 = vst.msk [vmem:[%s163] sm:$0xff] %vm220, %v234
        %239 = vst.msk [vmem:[%s163 + $0x8] sm:$0xff] %vm220, %v236
        %s240 = sand.u32 %s93, 1
        %s241 = scalar_lea.sflag [#allocation3], %s240
        %s242 = sand.u32 %s93, 1
        %s243 = smul.addr %s242, 16
        %s244 = scalar_lea.vmem [#allocation2], %s243
        // Predicated region
        $region33: #{tpu_custom_call.1} parent=31 // pred_check
          %p245 = pneg %p103
        $region34: #{tpu_custom_call.1} parent=31 // pred_check_branch
          %247 = sbr.rel (%p245) target = $region36
        $region35: #{tpu_custom_call.1} parent=31 // pred_region
          %249 = vsyncadd %s241, 0
          %s250 = smul.addr %s17, 2
          %s251 = smul.addr %s250, 8
          %s252 = scalar_lea.hbm %s3, %s251
          %s253 = sshll.u32 %s244, 4
          %s254 = int_to_ptr.vmem [resolvable:$true] %s253
          %s255 = sshll.u32 %s252, 4
          %s256 = int_to_ptr.hbm [resolvable:$true] %s255
          %261 = dma.vmem_to_hbm [thread:$0]  %s254, 256, %s256, %s241, 128, 128, 8
        $region36: #{tpu_custom_call.1} parent=31 // pred_fallthru
          _
      $region32: #{tpu_custom_call.1} parent=5 // pred_fallthru
        _
      %p262 = scmp.le.s32.totalorder 2, %s12
      // Predicated region
      $region37: #{tpu_custom_call.1} parent=5 // pred_check
        %p263 = pneg %p262
      $region38: #{tpu_custom_call.1} parent=5 // pred_check_branch
        %265 = sbr.rel (%p263) target = $region40
      $region39: #{tpu_custom_call.1} parent=5 // pred_region
        %s266 = ssub.s32 %s12, 2
        // Predicated region
        $region41: #{tpu_custom_call.1} parent=39 // pred_check
          %p267 = pneg %p109
        $region42: #{tpu_custom_call.1} parent=39 // pred_check_branch
          %269 = sbr.rel (%p267) target = $region44
        $region43: #{tpu_custom_call.1} parent=39 // pred_region
          %s270 = sand.u32 %s94, 1
          %s271 = scalar_lea.sflag [#allocation3], %s270
          %s272 = sand.u32 %s94, 1
          %s273 = smul.addr %s272, 16
          %s274 = scalar_lea.vmem [#allocation2], %s273
          %276 = dma.done %s271, 256
        $region44: #{tpu_custom_call.1} parent=39 // pred_fallthru
          _
      $region40: #{tpu_custom_call.1} parent=5 // pred_fallthru
        _
    $region6: #{tpu_custom_call.1} parent=1 // loop_footer
      %s16 = sadd.s32 1, %s12
    $region7: #{tpu_custom_call.1} parent=1 // loop_footer_branch
      %11 = sbr.rel target = $region3
    $region8: #{tpu_custom_call.1} parent=1 // loop_exit
      _
    %277 = vsyncpa [#allocation3], 1
    %s278 = scalar_lea.sflag [#allocation3], 1
    %279 = vsyncpa %s278, 1

</llo_original>
